<compile_context>
chip_gen: v6e
topology: v6e:2x2x1
jax: 0.10.0
libtpu: 0.0.40
codegen_flags: <defaults>
</compile_context>

<pallas_src>
import functools

import jax
import jax.numpy as jnp
from jax.experimental import pallas as pl
from jax.experimental.pallas import tpu as pltpu

BN_EPS = 1e-5
NEG_SLOPE = 0.2


def _leaky_relu(x):
    return jnp.where(x > 0, x, NEG_SLOPE * x)


def _round_up(n, m):
    return ((n + m - 1) // m) * m


def _vmem_limit_bytes():
    # Generation-aware VMEM budget with headroom (v5e/v6e: 128 MiB physical ->
    # ~96 MiB; v7x: 64 MiB -> 48 MiB).  Falls back to 48 MiB if the query is
    # unavailable.
    try:
        cap = int(pltpu.get_tpu_info().vmem_capacity_bytes)
    except Exception:
        cap = 64 * 1024 * 1024
    return int(min(cap * 3 // 4, 100 * 1024 * 1024))


# ---------------------------------------------------------------------------
# Fused path: whole forward in a single grid step (everything resident in VMEM)
# ---------------------------------------------------------------------------
def _fused_kernel(x_ref, w1_ref, b1_ref, w2_ref, b2_ref, w3_ref, b3_ref,
                  o_ref, *, b_valid):
    x = x_ref[...]                                                   # (Bp, F) bf16
    h1 = jnp.dot(x, w1_ref[...], preferred_element_type=jnp.float32) + b1_ref[...]
    h1 = _leaky_relu(h1)
    h2 = jnp.dot(h1.astype(jnp.bfloat16), w2_ref[...],
                 preferred_element_type=jnp.float32) + b2_ref[...]   # (Bp, H) f32

    bp = h2.shape[0]
    if bp != b_valid:  # static: mask batch-padding rows out of the BN stats
        row = jax.lax.broadcasted_iota(jnp.int32, (bp, 1), 0)
        h2s = jnp.where(row < b_valid, h2, 0.0)
    else:
        h2s = h2

    inv_n = 1.0 / b_valid
    mean = jnp.sum(h2s, axis=0, keepdims=True) * inv_n               # (1, H)
    var = jnp.sum(h2s * h2s, axis=0, keepdims=True) * inv_n - mean * mean
    var = jnp.maximum(var, 0.0)
    inv_std = jax.lax.rsqrt(var + BN_EPS)

    h2n = _leaky_relu((h2 - mean) * inv_std)
    z = jnp.dot(h2n.astype(jnp.bfloat16), w3_ref[...],
                preferred_element_type=jnp.float32) + b3_ref[...]
    o_ref[...] = z.astype(o_ref.dtype)


# ---------------------------------------------------------------------------
# Tiled fallback, pass 1: Linear1 -> LeakyReLU -> Linear2 ; per-tile BN stats
# ---------------------------------------------------------------------------
def _pass1_kernel(x_ref, w1_ref, b1_ref, w2_ref, b2_ref,
                  h2_ref, stats_ref, *, tb, b_valid, has_pad):
    h1 = jnp.dot(x_ref[...], w1_ref[...],
                 preferred_element_type=jnp.float32) + b1_ref[...]
    h1 = _leaky_relu(h1)
    h2 = jnp.dot(h1.astype(jnp.bfloat16), w2_ref[...],
                 preferred_element_type=jnp.float32) + b2_ref[...]   # (TB, H) f32

    # bf16 staging of h2 (stats below use the f32 value, so BN is unaffected).
    h2_ref[...] = h2.astype(h2_ref.dtype)

    def write_stats(vals):
        stats_ref[0:1, :] = jnp.sum(vals, axis=0, keepdims=True)
        stats_ref[1:2, :] = jnp.sum(vals * vals, axis=0, keepdims=True)

    if has_pad:
        i = pl.program_id(0)
        last = pl.num_programs(0) - 1

        @pl.when(i == last)  # only the last tile contains padded rows
        def _():
            row = i * tb + jax.lax.broadcasted_iota(jnp.int32, (tb, 1), 0)
            write_stats(jnp.where(row < b_valid, h2, 0.0))

        @pl.when(i != last)
        def _():
            write_stats(h2)
    else:
        write_stats(h2)


# ---------------------------------------------------------------------------
# Tiled fallback, pass 2: BN (precomputed scale/shift) -> LeakyReLU -> Linear3
# ---------------------------------------------------------------------------
def _pass2_kernel(h2_ref, scale_ref, shift_ref, w3_ref, b3_ref, o_ref):
    h2 = h2_ref[...].astype(jnp.float32)                             # (TB, H)
    h2n = _leaky_relu(h2 * scale_ref[...] + shift_ref[...])
    z = jnp.dot(h2n.astype(jnp.bfloat16), w3_ref[...],
                preferred_element_type=jnp.float32) + b3_ref[...]
    o_ref[...] = z.astype(o_ref.dtype)


# ---------------------------------------------------------------------------
# Parameter preparation (one-time cast / pad, hoisted out of the per-call path)
# ---------------------------------------------------------------------------
def prepare_params(params):
    """Cast weights to bf16, biases to f32, pad latent dim to a lane-dense 128."""
    bf16 = jnp.bfloat16
    w1 = params["w1"].astype(bf16)                                   # (F, H)
    b1 = params["b1"].astype(jnp.float32).reshape(1, -1)
    w2 = params["w2"].astype(bf16)                                   # (H, H)
    b2 = params["b2"].astype(jnp.float32).reshape(1, -1)
    H, Z = params["w3"].shape
    Zp = _round_up(Z, 128)
    w3 = jnp.zeros((H, Zp), bf16).at[:, :Z].set(params["w3"].astype(bf16))
    b3 = jnp.zeros((1, Zp), jnp.float32).at[:, :Z].set(
        params["b3"].astype(jnp.float32).reshape(1, -1))
    return dict(w1=w1, b1=b1, w2=w2, b2=b2, w3=w3, b3=b3)


# ---------------------------------------------------------------------------
# Forward
# ---------------------------------------------------------------------------
@functools.partial(jax.jit, static_argnames=("latent_dim", "tb", "force_tiled"))
def encoder_forward(x, prep, *, latent_dim, tb=1024, force_tiled=False):
    """x: (B, F) float32.  prep: output of prepare_params().  Returns (B, Z)."""
    B, F = x.shape
    H = prep["w1"].shape[1]
    Zp = prep["w3"].shape[1]
    vmem_limit = _vmem_limit_bytes()

    # ---- fused single-call path when everything fits comfortably in VMEM ----
    Bp_f = _round_up(B, 8)
    fused_bytes = (2 * (Bp_f * F * 2 + F * H * 2 + H * H * 2 + H * Zp * 2
                        + 2 * H * 4 + Zp * 4 + Bp_f * Zp * 4)
                   + 6 * Bp_f * H * 4)          # intermediates (h1/h2/h2n, acc)
    use_fused = (not force_tiled) and (fused_bytes <= vmem_limit // 2)

    if use_fused:
        Bp = Bp_f
        xk = x.astype(jnp.bfloat16)
        if Bp != B:
            xk = jnp.zeros((Bp, F), jnp.bfloat16).at[:B, :].set(xk)
        z_p = pl.pallas_call(
            functools.partial(_fused_kernel, b_valid=B),
            out_shape=jax.ShapeDtypeStruct((Bp, Zp), jnp.float32),
            compiler_params=pltpu.CompilerParams(vmem_limit_bytes=vmem_limit),
            cost_estimate=pl.CostEstimate(
                flops=2 * Bp * (F * H + H * H + H * Zp),
                transcendentals=0,
                bytes_accessed=(Bp * F * 2 + (F * H + H * H + H * Zp) * 2
                                + Bp * Zp * 4)),
        )(xk, prep["w1"], prep["b1"], prep["w2"], prep["b2"],
          prep["w3"], prep["b3"])
        return z_p[:B, :latent_dim]

    # ---- tiled two-pass path (large batches) ---------------------------------
    TB = min(_round_up(tb, 16), _round_up(B, 16))
    Bp = _round_up(B, TB)
    n_tiles = Bp // TB
    has_pad = Bp != B

    xk = x.astype(jnp.bfloat16)
    if has_pad:
        xk = jnp.zeros((Bp, F), jnp.bfloat16).at[:B, :].set(xk)

    h2, part_stats = pl.pallas_call(
        functools.partial(_pass1_kernel, tb=TB, b_valid=B, has_pad=has_pad),
        grid=(n_tiles,),
        in_specs=[
            pl.BlockSpec((TB, F), lambda i: (i, 0)),          # x tile
            pl.BlockSpec((F, H), lambda i: (0, 0)),           # w1 (resident)
            pl.BlockSpec((1, H), lambda i: (0, 0)),           # b1
            pl.BlockSpec((H, H), lambda i: (0, 0)),           # w2
            pl.BlockSpec((1, H), lambda i: (0, 0)),           # b2
        ],
        out_specs=[
            pl.BlockSpec((TB, H), lambda i: (i, 0)),          # h2 tile (bf16)
            pl.BlockSpec((None, 2, H), lambda i: (i, 0, 0)),  # per-tile stats
        ],
        out_shape=(
            jax.ShapeDtypeStruct((Bp, H), jnp.bfloat16),
            jax.ShapeDtypeStruct((n_tiles, 2, H), jnp.float32),
        ),
        compiler_params=pltpu.CompilerParams(
            dimension_semantics=("parallel",),   # per-tile partials -> megacore OK
            vmem_limit_bytes=vmem_limit,
        ),
        cost_estimate=pl.CostEstimate(
            flops=2 * Bp * (F * H + H * H),
            transcendentals=0,
            bytes_accessed=Bp * F * 2 + (F * H + H * H) * 2 + Bp * H * 2),
    )(xk, prep["w1"], prep["b1"], prep["w2"], prep["b2"])

    # Tiny (2, H) finish of the BN stats in plain JAX; fold into scale/shift.
    stats = jnp.sum(part_stats, axis=0)
    mean = stats[0:1, :] / B
    var = jnp.maximum(stats[1:2, :] / B - mean * mean, 0.0)
    inv_std = jax.lax.rsqrt(var + BN_EPS)
    scale = inv_std
    shift = -mean * inv_std

    z_p = pl.pallas_call(
        _pass2_kernel,
        grid=(n_tiles,),
        in_specs=[
            pl.BlockSpec((TB, H), lambda i: (i, 0)),          # h2 tile
            pl.BlockSpec((1, H), lambda i: (0, 0)),           # scale
            pl.BlockSpec((1, H), lambda i: (0, 0)),           # shift
            pl.BlockSpec((H, Zp), lambda i: (0, 0)),          # w3 (resident)
            pl.BlockSpec((1, Zp), lambda i: (0, 0)),          # b3
        ],
        out_specs=pl.BlockSpec((TB, Zp), lambda i: (i, 0)),
        out_shape=jax.ShapeDtypeStruct((Bp, Zp), jnp.float32),
        compiler_params=pltpu.CompilerParams(
            dimension_semantics=("parallel",),
            vmem_limit_bytes=vmem_limit,
        ),
        cost_estimate=pl.CostEstimate(
            flops=2 * Bp * H * Zp,
            transcendentals=0,
            bytes_accessed=Bp * H * 2 + H * Zp * 2 + Bp * Zp * 4),
    )(h2, scale, shift, prep["w3"], prep["b3"])

    return z_p[:B, :latent_dim]


# ---------------------------------------------------------------------------
# Parameters & reference
# ---------------------------------------------------------------------------
def init_params(key, in_features, hidden_dim, latent_dim):
    """Weights stored already transposed to (in, out); biases as (1, out)."""
    ks = jax.random.split(key, 6)

    def lin(kw, kb, fan_in, fan_out):
        bound = 1.0 / jnp.sqrt(fan_in)
        w = jax.random.uniform(kw, (fan_in, fan_out), jnp.float32, -bound, bound)
        b = jax.random.uniform(kb, (1, fan_out), jnp.float32, -bound, bound)
        return w, b

    w1, b1 = lin(ks[0], ks[1], in_features, hidden_dim)
    w2, b2 = lin(ks[2], ks[3], hidden_dim, hidden_dim)
    w3, b3 = lin(ks[4], ks[5], hidden_dim, latent_dim)
    return dict(w1=w1, b1=b1, w2=w2, b2=b2, w3=w3, b3=b3)


def encoder_reference(x, p):
    """Pure-JAX reference with the same numerics (bf16 MXU operands, f32 acc)."""
    bf = jnp.bfloat16
    h1 = _leaky_relu(
        jnp.dot(x.astype(bf), p["w1"].astype(bf),
                preferred_element_type=jnp.float32) + p["b1"])
    h2 = jnp.dot(h1.astype(bf), p["w2"].astype(bf),
                 preferred_element_type=jnp.float32) + p["b2"]
    mean = jnp.mean(h2, axis=0, keepdims=True)
    var = jnp.mean(h2 * h2, axis=0, keepdims=True) - mean * mean
    h2n = _leaky_relu((h2 - mean) * jax.lax.rsqrt(var + BN_EPS))
    return jnp.dot(h2n.astype(bf), p["w3"].astype(bf),
                   preferred_element_type=jnp.float32) + p["b3"]


if __name__ == "__main__":
    # Small shapes consistent with the module (in_features, hidden_dim, latent_dim).
    B, F, H, Z = 256, 64, 128, 16

    key = jax.random.PRNGKey(0)
    kx, kp = jax.random.split(key)
    x = jax.random.normal(kx, (B, F), dtype=jnp.float32)
    params = init_params(kp, in_features=F, hidden_dim=H, latent_dim=Z)
    prep = prepare_params(params)

    ref = encoder_reference(x, params)

    # Default: fused single-pallas_call path (h2 never leaves VMEM).
    out = jax.block_until_ready(encoder_forward(x, prep, latent_dim=Z))
    assert out.shape == (B, Z)
    err = float(jnp.max(jnp.abs(out - ref)))
    assert err < 2e-2, f"fused path mismatch vs pure-JAX reference (max err {err})"

    # Large-batch fallback: tiled two-pass path with bf16 h2 staging and
    # per-tile BN partial stats (forced here with 2 batch tiles).
    out_t = jax.block_until_ready(
        encoder_forward(x, prep, latent_dim=Z, tb=128, force_tiled=True))
    err_t = float(jnp.max(jnp.abs(out_t - ref)))
    assert err_t < 2e-2, f"tiled path mismatch vs pure-JAX reference (max err {err_t})"

    print("KERNEL_OK")
</pallas_src>

<mosaic_0001>
module attributes {stable_mosaic.version = 11 : i64} {
  func.func @_fused_kernel(%arg0: memref<256x64xbf16, #tpu.memory_space<vmem>>, %arg1: memref<64x128xbf16, #tpu.memory_space<vmem>>, %arg2: memref<1x128xf32, #tpu.memory_space<vmem>>, %arg3: memref<128x128xbf16, #tpu.memory_space<vmem>>, %arg4: memref<1x128xf32, #tpu.memory_space<vmem>>, %arg5: memref<128x128xbf16, #tpu.memory_space<vmem>>, %arg6: memref<1x128xf32, #tpu.memory_space<vmem>>, %arg7: memref<256x128xf32, #tpu.memory_space<vmem>>) attributes {dimension_semantics = [], scalar_prefetch = 0 : i64, scratch_operands = 0 : i64, tpu.core_type = #tpu.core_type<tc>} {
    %c0 = arith.constant 0 : index
    %c0_0 = arith.constant 0 : index
    %0 = vector.load %arg0[%c0, %c0_0] : memref<256x64xbf16, #tpu.memory_space<vmem>>, vector<256x64xbf16>
    %c0_1 = arith.constant 0 : index
    %c0_2 = arith.constant 0 : index
    %1 = vector.load %arg1[%c0_1, %c0_2] : memref<64x128xbf16, #tpu.memory_space<vmem>>, vector<64x128xbf16>
    %cst = arith.constant dense<0.000000e+00> : vector<256x128xf32>
    %2 = tpu.matmul %0, %1, %cst {dimension_numbers = #tpu.dot_dimension_numbers<[1], [0], [0], [1], [0, 0, 1, 1], [], []>} : vector<256x64xbf16>, vector<64x128xbf16>, vector<256x128xf32> -> vector<256x128xf32>
    %c0_3 = arith.constant 0 : index
    %c0_4 = arith.constant 0 : index
    %3 = vector.load %arg2[%c0_3, %c0_4] : memref<1x128xf32, #tpu.memory_space<vmem>>, vector<1x128xf32>
    %4 = vector.broadcast %3 : vector<1x128xf32> to vector<256x128xf32>
    %5 = arith.addf %2, %4 : vector<256x128xf32>
    %cst_5 = arith.constant 0.000000e+00 : f32
    %6 = vector.broadcast %cst_5 : f32 to vector<256x128xf32>
    %7 = arith.cmpf ogt, %5, %6 : vector<256x128xf32>
    %cst_6 = arith.constant 2.000000e-01 : f32
    %8 = vector.broadcast %cst_6 : f32 to vector<256x128xf32>
    %9 = arith.mulf %8, %5 : vector<256x128xf32>
    %10 = arith.select %7, %5, %9 : vector<256x128xi1>, vector<256x128xf32>
    %11 = arith.truncf %10 : vector<256x128xf32> to vector<256x128xbf16>
    %c0_7 = arith.constant 0 : index
    %c0_8 = arith.constant 0 : index
    %12 = vector.load %arg3[%c0_7, %c0_8] : memref<128x128xbf16, #tpu.memory_space<vmem>>, vector<128x128xbf16>
    %cst_9 = arith.constant dense<0.000000e+00> : vector<256x128xf32>
    %13 = tpu.matmul %11, %12, %cst_9 {dimension_numbers = #tpu.dot_dimension_numbers<[1], [0], [0], [1], [0, 0, 1, 1], [], []>} : vector<256x128xbf16>, vector<128x128xbf16>, vector<256x128xf32> -> vector<256x128xf32>
    %c0_10 = arith.constant 0 : index
    %c0_11 = arith.constant 0 : index
    %14 = vector.load %arg4[%c0_10, %c0_11] : memref<1x128xf32, #tpu.memory_space<vmem>>, vector<1x128xf32>
    %15 = vector.broadcast %14 : vector<1x128xf32> to vector<256x128xf32>
    %16 = arith.addf %13, %15 : vector<256x128xf32>
    %cst_12 = arith.constant dense<0.000000e+00> : vector<128xf32>
    %17 = vector.multi_reduction <add>, %16, %cst_12 [0] : vector<256x128xf32> to vector<128xf32>
    %18 = vector.shape_cast %17 : vector<128xf32> to vector<1x128xf32>
    %cst_13 = arith.constant 3.906250e-03 : f32
    %19 = vector.broadcast %cst_13 : f32 to vector<1x128xf32>
    %20 = arith.mulf %18, %19 : vector<1x128xf32>
    %21 = arith.mulf %16, %16 : vector<256x128xf32>
    %cst_14 = arith.constant dense<0.000000e+00> : vector<128xf32>
    %22 = vector.multi_reduction <add>, %21, %cst_14 [0] : vector<256x128xf32> to vector<128xf32>
    %23 = vector.shape_cast %22 : vector<128xf32> to vector<1x128xf32>
    %cst_15 = arith.constant 3.906250e-03 : f32
    %24 = vector.broadcast %cst_15 : f32 to vector<1x128xf32>
    %25 = arith.mulf %23, %24 : vector<1x128xf32>
    %26 = arith.mulf %20, %20 : vector<1x128xf32>
    %27 = arith.subf %25, %26 : vector<1x128xf32>
    %cst_16 = arith.constant 0.000000e+00 : f32
    %28 = vector.broadcast %cst_16 : f32 to vector<1x128xf32>
    %29 = arith.maximumf %27, %28 : vector<1x128xf32>
    %cst_17 = arith.constant 9.99999974E-6 : f32
    %30 = vector.broadcast %cst_17 : f32 to vector<1x128xf32>
    %31 = arith.addf %29, %30 : vector<1x128xf32>
    %32 = math.rsqrt %31 : vector<1x128xf32>
    %33 = vector.broadcast %20 : vector<1x128xf32> to vector<256x128xf32>
    %34 = arith.subf %16, %33 : vector<256x128xf32>
    %35 = vector.broadcast %32 : vector<1x128xf32> to vector<256x128xf32>
    %36 = arith.mulf %34, %35 : vector<256x128xf32>
    %cst_18 = arith.constant 0.000000e+00 : f32
    %37 = vector.broadcast %cst_18 : f32 to vector<256x128xf32>
    %38 = arith.cmpf ogt, %36, %37 : vector<256x128xf32>
    %cst_19 = arith.constant 2.000000e-01 : f32
    %39 = vector.broadcast %cst_19 : f32 to vector<256x128xf32>
    %40 = arith.mulf %39, %36 : vector<256x128xf32>
    %41 = arith.select %38, %36, %40 : vector<256x128xi1>, vector<256x128xf32>
    %42 = arith.truncf %41 : vector<256x128xf32> to vector<256x128xbf16>
    %c0_20 = arith.constant 0 : index
    %c0_21 = arith.constant 0 : index
    %43 = vector.load %arg5[%c0_20, %c0_21] : memref<128x128xbf16, #tpu.memory_space<vmem>>, vector<128x128xbf16>
    %cst_22 = arith.constant dense<0.000000e+00> : vector<256x128xf32>
    %44 = tpu.matmul %42, %43, %cst_22 {dimension_numbers = #tpu.dot_dimension_numbers<[1], [0], [0], [1], [0, 0, 1, 1], [], []>} : vector<256x128xbf16>, vector<128x128xbf16>, vector<256x128xf32> -> vector<256x128xf32>
    %c0_23 = arith.constant 0 : index
    %c0_24 = arith.constant 0 : index
    %45 = vector.load %arg6[%c0_23, %c0_24] : memref<1x128xf32, #tpu.memory_space<vmem>>, vector<1x128xf32>
    %46 = vector.broadcast %45 : vector<1x128xf32> to vector<256x128xf32>
    %47 = arith.addf %44, %46 : vector<256x128xf32>
    %c0_25 = arith.constant 0 : index
    %c0_26 = arith.constant 0 : index
    %48 = vector.load %arg7[%c0_25, %c0_26] : memref<256x128xf32, #tpu.memory_space<vmem>>, vector<256x128xf32>
    tpu.vector_store %arg7[%c0_25, %c0_26], %47 {strides = array<i32>} : memref<256x128xf32, #tpu.memory_space<vmem>>, vector<256x128xf32>,
    return
  }
}

</mosaic_0001>

<llo_original>
// kernel: encoder_forward.1
$region0: #{encoder_forward.1}
  #allocation0 [shape = 'u32[]', space=smem, size = 0x4, offset = 0x4, fixed_abs, tag = 'smem constant byte address 0x4 - core index']
  #allocation1 [shape = 'u32[144,128]{1,0:T(1,128)}', space=vmem, size = 0x12000, scoped, tag = 'internal scratch']
  %s0 = inlined_call_operand.vmem [shape: bf16[256,64], index: 0, kind: input, shape index: {}]
  %s1 = inlined_call_operand.vmem [shape: bf16[64,128], index: 1, kind: input, shape index: {}]
  %s2 = inlined_call_operand.vmem [shape: f32[1,128], index: 2, kind: input, shape index: {}]
  %s3 = inlined_call_operand.vmem [shape: bf16[128,128], index: 3, kind: input, shape index: {}]
  %s4 = inlined_call_operand.vmem [shape: f32[1,128], index: 4, kind: input, shape index: {}]
  %s5 = inlined_call_operand.vmem [shape: bf16[128,128], index: 5, kind: input, shape index: {}]
  %s6 = inlined_call_operand.vmem [shape: f32[1,128], index: 6, kind: input, shape index: {}]
  %s7 = inlined_call_operand.vmem [shape: f32[256,128], index: 7, kind: output, shape index: {}]
  %s8 = sld [smem:[#allocation0]]
  $region38: #{encoder_forward.1} parent=0
    _
  %s10 = ssub.s32 1, %s8
  %s11 = scalar_select 0, %s10, %s8
  // Predicated region
  $region2: #{encoder_forward.1} parent=0 // pred_check
    _
  $region3: #{encoder_forward.1} parent=0 // pred_check_branch
    %13 = sbr.rel (0) target = $region5
  $region4: #{encoder_forward.1} parent=0 // pred_region
    _
  $region5: #{encoder_forward.1} parent=0 // pred_fallthru
    _
  // Predicated region
  $region6: #{encoder_forward.1} parent=0 // pred_check
    _
  $region7: #{encoder_forward.1} parent=0 // pred_check_branch
    %15 = sbr.rel (0) target = $region9
  $region8: #{encoder_forward.1} parent=0 // pred_region
    _
  $region9: #{encoder_forward.1} parent=0 // pred_fallthru
    _
  // Predicated region
  $region10: #{encoder_forward.1} parent=0 // pred_check
    _
  $region11: #{encoder_forward.1} parent=0 // pred_check_branch
    %17 = sbr.rel (0) target = $region13
  $region12: #{encoder_forward.1} parent=0 // pred_region
    _
  $region13: #{encoder_forward.1} parent=0 // pred_fallthru
    _
  // Predicated region
  $region14: #{encoder_forward.1} parent=0 // pred_check
    _
  $region15: #{encoder_forward.1} parent=0 // pred_check_branch
    %19 = sbr.rel (0) target = $region17
  $region16: #{encoder_forward.1} parent=0 // pred_region
    _
  $region17: #{encoder_forward.1} parent=0 // pred_fallthru
    _
  // Predicated region
  $region18: #{encoder_forward.1} parent=0 // pred_check
    _
  $region19: #{encoder_forward.1} parent=0 // pred_check_branch
    %21 = sbr.rel (0) target = $region21
  $region20: #{encoder_forward.1} parent=0 // pred_region
    _
  $region21: #{encoder_forward.1} parent=0 // pred_fallthru
    _
  // Predicated region
  $region22: #{encoder_forward.1} parent=0 // pred_check
    _
  $region23: #{encoder_forward.1} parent=0 // pred_check_branch
    %23 = sbr.rel (0) target = $region25
  $region24: #{encoder_forward.1} parent=0 // pred_region
    _
  $region25: #{encoder_forward.1} parent=0 // pred_fallthru
    _
  // Predicated region
  $region26: #{encoder_forward.1} parent=0 // pred_check
    _
  $region27: #{encoder_forward.1} parent=0 // pred_check_branch
    %25 = sbr.rel (0) target = $region29
  $region28: #{encoder_forward.1} parent=0 // pred_region
    _
  $region29: #{encoder_forward.1} parent=0 // pred_fallthru
    _
  %v27 = vld [vmem:[%s0] sm:$0xf]
  %v28 = vld [vmem:[%s0 + $0x4] sm:$0xf]
  %v29 = vld [vmem:[%s0 + $0x8] sm:$0xf]
  %v30 = vld [vmem:[%s0 + $0xc] sm:$0xf]
  %v31 = vld [vmem:[%s0 + $0x10] sm:$0xf]
  %v32 = vld [vmem:[%s0 + $0x14] sm:$0xf]
  %v33 = vld [vmem:[%s0 + $0x18] sm:$0xf]
  %v34 = vld [vmem:[%s0 + $0x1c] sm:$0xf]
  %v35 = vld [vmem:[%s0 + $0x20] sm:$0xf]
  %v36 = vld [vmem:[%s0 + $0x24] sm:$0xf]
  %v37 = vld [vmem:[%s0 + $0x28] sm:$0xf]
  %v38 = vld [vmem:[%s0 + $0x2c] sm:$0xf]
  %v39 = vld [vmem:[%s0 + $0x30] sm:$0xf]
  %v40 = vld [vmem:[%s0 + $0x34] sm:$0xf]
  %v41 = vld [vmem:[%s0 + $0x38] sm:$0xf]
  %v42 = vld [vmem:[%s0 + $0x3c] sm:$0xf]
  %v43 = vld [vmem:[%s0 + $0x40] sm:$0xf]
  %v44 = vld [vmem:[%s0 + $0x44] sm:$0xf]
  %v45 = vld [vmem:[%s0 + $0x48] sm:$0xf]
  %v46 = vld [vmem:[%s0 + $0x4c] sm:$0xf]
  %v47 = vld [vmem:[%s0 + $0x50] sm:$0xf]
  %v48 = vld [vmem:[%s0 + $0x54] sm:$0xf]
  %v49 = vld [vmem:[%s0 + $0x58] sm:$0xf]
  %v50 = vld [vmem:[%s0 + $0x5c] sm:$0xf]
  %v51 = vld [vmem:[%s0 + $0x60] sm:$0xf]
  %v52 = vld [vmem:[%s0 + $0x64] sm:$0xf]
  %v53 = vld [vmem:[%s0 + $0x68] sm:$0xf]
  %v54 = vld [vmem:[%s0 + $0x6c] sm:$0xf]
  %v55 = vld [vmem:[%s0 + $0x70] sm:$0xf]
  %v56 = vld [vmem:[%s0 + $0x74] sm:$0xf]
  %v57 = vld [vmem:[%s0 + $0x78] sm:$0xf]
  %v58 = vld [vmem:[%s0 + $0x7c] sm:$0xf]
  %v59 = vld [vmem:[%s1] sm:$0xf]
  %v60 = vld [vmem:[%s1 + $0x4] sm:$0xf]
  %v61 = vld [vmem:[%s1 + $0x8] sm:$0xf]
  %v62 = vld [vmem:[%s1 + $0xc] sm:$0xf]
  %v63 = vld [vmem:[%s1 + $0x10] sm:$0xf]
  %v64 = vld [vmem:[%s1 + $0x14] sm:$0xf]
  %v65 = vld [vmem:[%s1 + $0x18] sm:$0xf]
  %v66 = vld [vmem:[%s1 + $0x1c] sm:$0xf]
  %v67 = vld [vmem:[%s2] sm:$0x1]
  %v69 = vlaneseq
  %v70 = vshrl.u32 %v69, 7
  %v71 = vsub.s32 0, %v70
  %v72 = vrot.slane %v67, %v71
  %v106 = vunpack.c.l.b16 %v27
  %v107 = vunpack.c.l.b16 %v28
  %v108 = vunpack.c.l.b16 %v29
  %v109 = vunpack.c.l.b16 %v30
  %v110 = vunpack.c.l.b16 %v31
  %v111 = vunpack.c.l.b16 %v32
  %v112 = vunpack.c.l.b16 %v33
  %v113 = vunpack.c.l.b16 %v34
  %v114 = vunpack.c.l.b16 %v35
  %v115 = vunpack.c.l.b16 %v36
  %v116 = vunpack.c.l.b16 %v37
  %v117 = vunpack.c.l.b16 %v38
  %v118 = vunpack.c.l.b16 %v39
  %v119 = vunpack.c.l.b16 %v40
  %v120 = vunpack.c.l.b16 %v41
  %v121 = vunpack.c.l.b16 %v42
  %v122 = vunpack.c.l.b16 %v43
  %v123 = vunpack.c.l.b16 %v44
  %v124 = vunpack.c.l.b16 %v45
  %v125 = vunpack.c.l.b16 %v46
  %v126 = vunpack.c.l.b16 %v47
  %v127 = vunpack.c.l.b16 %v48
  %v128 = vunpack.c.l.b16 %v49
  %v129 = vunpack.c.l.b16 %v50
  %v130 = vunpack.c.l.b16 %v51
  %v131 = vunpack.c.l.b16 %v52
  %v132 = vunpack.c.l.b16 %v53
  %v133 = vunpack.c.l.b16 %v54
  %v134 = vunpack.c.l.b16 %v55
  %v135 = vunpack.c.l.b16 %v56
  %v136 = vunpack.c.l.b16 %v57
  %v137 = vunpack.c.l.b16 %v58
  %v138 = vpack.c.b16 %v107, %v106
  %v139 = vpack.c.b16 %v109, %v108
  %v140 = vpack.c.b16 %v111, %v110
  %v141 = vpack.c.b16 %v113, %v112
  %v142 = vpack.c.b16 %v115, %v114
  %v143 = vpack.c.b16 %v117, %v116
  %v144 = vpack.c.b16 %v119, %v118
  %v145 = vpack.c.b16 %v121, %v120
  %v146 = vpack.c.b16 %v123, %v122
  %v147 = vpack.c.b16 %v125, %v124
  %v148 = vpack.c.b16 %v127, %v126
  %v149 = vpack.c.b16 %v129, %v128
  %v150 = vpack.c.b16 %v131, %v130
  %v151 = vpack.c.b16 %v133, %v132
  %v152 = vpack.c.b16 %v135, %v134
  %v153 = vpack.c.b16 %v137, %v136
  %v162 = vunpack.c.l.b16 %v59
  %v163 = vunpack.c.l.b16 %v60
  %v164 = vunpack.c.l.b16 %v61
  %v165 = vunpack.c.l.b16 %v62
  %v166 = vunpack.c.l.b16 %v63
  %v167 = vunpack.c.l.b16 %v64
  %v168 = vunpack.c.l.b16 %v65
  %v169 = vunpack.c.l.b16 %v66
  %v170 = vpack.c.b16 %v163, %v162
  %v171 = vpack.c.b16 %v165, %v164
  %v172 = vpack.c.b16 %v167, %v166
  %v173 = vpack.c.b16 %v169, %v168
  %vm178 = vcmask 523264
  %v180 = vsel %vm178, %v138, 0
  %v183 = vsel %vm178, %v139, 0
  %v186 = vsel %vm178, %v140, 0
  %v189 = vsel %vm178, %v141, 0
  %v192 = vsel %vm178, %v142, 0
  %v195 = vsel %vm178, %v143, 0
  %v198 = vsel %vm178, %v144, 0
  %v201 = vsel %vm178, %v145, 0
  %v204 = vsel %vm178, %v146, 0
  %v207 = vsel %vm178, %v147, 0
  %v210 = vsel %vm178, %v148, 0
  %v213 = vsel %vm178, %v149, 0
  %v216 = vsel %vm178, %v150, 0
  %v219 = vsel %vm178, %v151, 0
  %v222 = vsel %vm178, %v152, 0
  %v225 = vsel %vm178, %v153, 0
  %227 = vmatprep.subr.bf16.mxu0 0
  %228 = vmatpush1.bf16.msra.mxu0 0
  %229 = vmatprep.subr.bf16.mxu0 0
  %230 = vmatpush1.bf16.msra.mxu0 0
  %231 = vmatprep.subr.bf16.mxu0 0
  %232 = vmatpush1.bf16.msra.mxu0 0
  %233 = vmatprep.subr.bf16.mxu0 0
  %234 = vmatpush1.bf16.msra.mxu0 0
  %235 = vmatprep.subr.bf16.mxu0 0
  %236 = vmatpush1.bf16.msra.mxu0 %v173
  %237 = vmatprep.subr.bf16.mxu0 0
  %238 = vmatpush1.bf16.msra.mxu0 %v172
  %239 = vmatprep.subr.bf16.mxu0 0
  %240 = vmatpush1.bf16.msra.mxu0 %v171
  %241 = vmatprep.subr.bf16.mxu0 0
  %242 = vmatpush1.bf16.msra.mxu0 %v170
  %243 = vmatprep.subr.bf16.mxu0 0
  %244 = vmatpush2.bf16.msra.mxu0 0
  %245 = vmatprep.subr.bf16.mxu0 0
  %246 = vmatpush2.bf16.msra.mxu0 0
  %247 = vmatprep.subr.bf16.mxu0 0
  %248 = vmatpush2.bf16.msra.mxu0 0
  %249 = vmatprep.subr.bf16.mxu0 0
  %250 = vmatpush2.bf16.msra.mxu0 0
  %251 = vmatprep.subr.bf16.mxu0 0
  %252 = vmatpush2.bf16.msra.mxu0 0
  %253 = vmatprep.subr.bf16.mxu0 0
  %254 = vmatpush2.bf16.msra.mxu0 0
  %255 = vmatprep.subr.bf16.mxu0 0
  %256 = vmatpush2.bf16.msra.mxu0 0
  %257 = vmatprep.subr.bf16.mxu0 0
  %258 = vmatpush2.bf16.msra.mxu0 0
  %259 = vmatprep.mubr.bf16.mxu0 0
  %260 = vmatmul.mubr.bf16.gmra.mxu0 %v180
  %v261 = vpop.f32.mrf.mxu0
  %v262 = vadd.f32 %v72, %v261
  %v263 = vpop.f32.mrf.mxu0
  %v264 = vpop.f32.mrf.mxu0
  %v265 = vadd.f32 %v72, %v264
  %v266 = vpop.f32.mrf.mxu0
  %267 = vmatprep.mubr.bf16.mxu0 0
  %268 = vmatmul.mubr.bf16.gmra.mxu0 %v183
  %v269 = vpop.f32.mrf.mxu0
  %v270 = vadd.f32 %v72, %v269
  %v271 = vpop.f32.mrf.mxu0
  %v272 = vpop.f32.mrf.mxu0
  %v273 = vadd.f32 %v72, %v272
  %v274 = vpop.f32.mrf.mxu0
  %275 = vmatprep.mubr.bf16.mxu0 0
  %276 = vmatmul.mubr.bf16.gmra.mxu0 %v186
  %v277 = vpop.f32.mrf.mxu0
  %v278 = vadd.f32 %v72, %v277
  %v279 = vpop.f32.mrf.mxu0
  %v280 = vpop.f32.mrf.mxu0
  %v281 = vadd.f32 %v72, %v280
  %v282 = vpop.f32.mrf.mxu0
  %283 = vmatprep.mubr.bf16.mxu0 0
  %284 = vmatmul.mubr.bf16.gmra.mxu0 %v189
  %v285 = vpop.f32.mrf.mxu0
  %v286 = vadd.f32 %v72, %v285
  %v287 = vpop.f32.mrf.mxu0
  %v288 = vpop.f32.mrf.mxu0
  %v289 = vadd.f32 %v72, %v288
  %v290 = vpop.f32.mrf.mxu0
  %291 = vmatprep.mubr.bf16.mxu0 0
  %292 = vmatmul.mubr.bf16.gmra.mxu0 %v192
  %v293 = vpop.f32.mrf.mxu0
  %v294 = vadd.f32 %v72, %v293
  %v295 = vpop.f32.mrf.mxu0
  %v296 = vpop.f32.mrf.mxu0
  %v297 = vadd.f32 %v72, %v296
  %v298 = vpop.f32.mrf.mxu0
  %299 = vmatprep.mubr.bf16.mxu0 0
  %300 = vmatmul.mubr.bf16.gmra.mxu0 %v195
  %v301 = vpop.f32.mrf.mxu0
  %v302 = vadd.f32 %v72, %v301
  %v303 = vpop.f32.mrf.mxu0
  %v304 = vpop.f32.mrf.mxu0
  %v305 = vadd.f32 %v72, %v304
  %v306 = vpop.f32.mrf.mxu0
  %307 = vmatprep.mubr.bf16.mxu0 0
  %308 = vmatmul.mubr.bf16.gmra.mxu0 %v198
  %v309 = vpop.f32.mrf.mxu0
  %v310 = vadd.f32 %v72, %v309
  %v311 = vpop.f32.mrf.mxu0
  %v312 = vpop.f32.mrf.mxu0
  %v313 = vadd.f32 %v72, %v312
  %v314 = vpop.f32.mrf.mxu0
  %315 = vmatprep.mubr.bf16.mxu0 0
  %316 = vmatmul.mubr.bf16.gmra.mxu0 %v201
  %v317 = vpop.f32.mrf.mxu0
  %v318 = vadd.f32 %v72, %v317
  %v319 = vpop.f32.mrf.mxu0
  %v320 = vpop.f32.mrf.mxu0
  %v321 = vadd.f32 %v72, %v320
  %v322 = vpop.f32.mrf.mxu0
  %323 = vmatprep.mubr.bf16.mxu0 0
  %324 = vmatmul.mubr.bf16.gmra.mxu0 %v204
  %v325 = vpop.f32.mrf.mxu0
  %v326 = vadd.f32 %v72, %v325
  %v327 = vpop.f32.mrf.mxu0
  %v328 = vpop.f32.mrf.mxu0
  %v329 = vadd.f32 %v72, %v328
  %v330 = vpop.f32.mrf.mxu0
  %331 = vmatprep.mubr.bf16.mxu0 0
  %332 = vmatmul.mubr.bf16.gmra.mxu0 %v207
  %v333 = vpop.f32.mrf.mxu0
  %v334 = vadd.f32 %v72, %v333
  %v335 = vpop.f32.mrf.mxu0
  %v336 = vpop.f32.mrf.mxu0
  %v337 = vadd.f32 %v72, %v336
  %v338 = vpop.f32.mrf.mxu0
  %339 = vmatprep.mubr.bf16.mxu0 0
  %340 = vmatmul.mubr.bf16.gmra.mxu0 %v210
  %v341 = vpop.f32.mrf.mxu0
  %v342 = vadd.f32 %v72, %v341
  %v343 = vpop.f32.mrf.mxu0
  %v344 = vpop.f32.mrf.mxu0
  %v345 = vadd.f32 %v72, %v344
  %v346 = vpop.f32.mrf.mxu0
  %347 = vmatprep.mubr.bf16.mxu0 0
  %348 = vmatmul.mubr.bf16.gmra.mxu0 %v213
  %v349 = vpop.f32.mrf.mxu0
  %v350 = vadd.f32 %v72, %v349
  %v351 = vpop.f32.mrf.mxu0
  %v352 = vpop.f32.mrf.mxu0
  %v353 = vadd.f32 %v72, %v352
  %v354 = vpop.f32.mrf.mxu0
  %355 = vmatprep.mubr.bf16.mxu0 0
  %356 = vmatmul.mubr.bf16.gmra.mxu0 %v216
  %v357 = vpop.f32.mrf.mxu0
  %v358 = vadd.f32 %v72, %v357
  %v359 = vpop.f32.mrf.mxu0
  %v360 = vpop.f32.mrf.mxu0
  %v361 = vadd.f32 %v72, %v360
  %v362 = vpop.f32.mrf.mxu0
  %363 = vmatprep.mubr.bf16.mxu0 0
  %364 = vmatmul.mubr.bf16.gmra.mxu0 %v219
  %v365 = vpop.f32.mrf.mxu0
  %v366 = vadd.f32 %v72, %v365
  %v367 = vpop.f32.mrf.mxu0
  %v368 = vpop.f32.mrf.mxu0
  %v369 = vadd.f32 %v72, %v368
  %v370 = vpop.f32.mrf.mxu0
  %371 = vmatprep.mubr.bf16.mxu0 0
  %372 = vmatmul.mubr.bf16.gmra.mxu0 %v222
  %v373 = vpop.f32.mrf.mxu0
  %v374 = vadd.f32 %v72, %v373
  %v375 = vpop.f32.mrf.mxu0
  %v376 = vpop.f32.mrf.mxu0
  %v377 = vadd.f32 %v72, %v376
  %v378 = vpop.f32.mrf.mxu0
  %379 = vmatprep.mubr.bf16.mxu0 0
  %380 = vmatmul.mubr.bf16.gmra.mxu0 %v225
  %v381 = vpop.f32.mrf.mxu0
  %v382 = vadd.f32 %v72, %v381
  %v383 = vpop.f32.mrf.mxu0
  %v384 = vpop.f32.mrf.mxu0
  %v385 = vadd.f32 %v72, %v384
  %v386 = vpop.f32.mrf.mxu0
  %387 = vdwg.mxu0
  %vm388 = vcmp.gt.f32.partialorder %v262, 0.0
  %vm389 = vcmp.gt.f32.partialorder %v265, 0.0
  %vm390 = vcmp.gt.f32.partialorder %v270, 0.0
  %vm391 = vcmp.gt.f32.partialorder %v273, 0.0
  %vm392 = vcmp.gt.f32.partialorder %v278, 0.0
  %vm393 = vcmp.gt.f32.partialorder %v281, 0.0
  %vm394 = vcmp.gt.f32.partialorder %v286, 0.0
  %vm395 = vcmp.gt.f32.partialorder %v289, 0.0
  %vm396 = vcmp.gt.f32.partialorder %v294, 0.0
  %vm397 = vcmp.gt.f32.partialorder %v297, 0.0
  %vm398 = vcmp.gt.f32.partialorder %v302, 0.0
  %vm399 = vcmp.gt.f32.partialorder %v305, 0.0
  %vm400 = vcmp.gt.f32.partialorder %v310, 0.0
  %vm401 = vcmp.gt.f32.partialorder %v313, 0.0
  %vm402 = vcmp.gt.f32.partialorder %v318, 0.0
  %vm403 = vcmp.gt.f32.partialorder %v321, 0.0
  %vm404 = vcmp.gt.f32.partialorder %v326, 0.0
  %vm405 = vcmp.gt.f32.partialorder %v329, 0.0
  %vm406 = vcmp.gt.f32.partialorder %v334, 0.0
  %vm407 = vcmp.gt.f32.partialorder %v337, 0.0
  %vm408 = vcmp.gt.f32.partialorder %v342, 0.0
  %vm409 = vcmp.gt.f32.partialorder %v345, 0.0
  %vm410 = vcmp.gt.f32.partialorder %v350, 0.0
  %vm411 = vcmp.gt.f32.partialorder %v353, 0.0
  %vm412 = vcmp.gt.f32.partialorder %v358, 0.0
  %vm413 = vcmp.gt.f32.partialorder %v361, 0.0
  %vm414 = vcmp.gt.f32.partialorder %v366, 0.0
  %vm415 = vcmp.gt.f32.partialorder %v369, 0.0
  %vm416 = vcmp.gt.f32.partialorder %v374, 0.0
  %vm417 = vcmp.gt.f32.partialorder %v377, 0.0
  %vm418 = vcmp.gt.f32.partialorder %v382, 0.0
  %vm419 = vcmp.gt.f32.partialorder %v385, 0.0
  %v420 = vmul.f32 %v262, 0.2
  %v421 = vmul.f32 %v265, 0.2
  %v422 = vmul.f32 %v270, 0.2
  %v423 = vmul.f32 %v273, 0.2
  %v424 = vmul.f32 %v278, 0.2
  %v425 = vmul.f32 %v281, 0.2
  %v426 = vmul.f32 %v286, 0.2
  %v427 = vmul.f32 %v289, 0.2
  %v428 = vmul.f32 %v294, 0.2
  %v429 = vmul.f32 %v297, 0.2
  %v430 = vmul.f32 %v302, 0.2
  %v431 = vmul.f32 %v305, 0.2
  %v432 = vmul.f32 %v310, 0.2
  %v433 = vmul.f32 %v313, 0.2
  %v434 = vmul.f32 %v318, 0.2
  %v435 = vmul.f32 %v321, 0.2
  %v436 = vmul.f32 %v326, 0.2
  %v437 = vmul.f32 %v329, 0.2
  %v438 = vmul.f32 %v334, 0.2
  %v439 = vmul.f32 %v337, 0.2
  %v440 = vmul.f32 %v342, 0.2
  %v441 = vmul.f32 %v345, 0.2
  %v442 = vmul.f32 %v350, 0.2
  %v443 = vmul.f32 %v353, 0.2
  %v444 = vmul.f32 %v358, 0.2
  %v445 = vmul.f32 %v361, 0.2
  %v446 = vmul.f32 %v366, 0.2
  %v447 = vmul.f32 %v369, 0.2
  %v448 = vmul.f32 %v374, 0.2
  %v449 = vmul.f32 %v377, 0.2
  %v450 = vmul.f32 %v382, 0.2
  %v451 = vmul.f32 %v385, 0.2
  %v452 = vsel %vm388, %v262, %v420
  %v453 = vsel %vm389, %v265, %v421
  %v454 = vsel %vm390, %v270, %v422
  %v455 = vsel %vm391, %v273, %v423
  %v456 = vsel %vm392, %v278, %v424
  %v457 = vsel %vm393, %v281, %v425
  %v458 = vsel %vm394, %v286, %v426
  %v459 = vsel %vm395, %v289, %v427
  %v460 = vsel %vm396, %v294, %v428
  %v461 = vsel %vm397, %v297, %v429
  %v462 = vsel %vm398, %v302, %v430
  %v463 = vsel %vm399, %v305, %v431
  %v464 = vsel %vm400, %v310, %v432
  %v465 = vsel %vm401, %v313, %v433
  %v466 = vsel %vm402, %v318, %v434
  %v467 = vsel %vm403, %v321, %v435
  %v468 = vsel %vm404, %v326, %v436
  %v469 = vsel %vm405, %v329, %v437
  %v470 = vsel %vm406, %v334, %v438
  %v471 = vsel %vm407, %v337, %v439
  %v472 = vsel %vm408, %v342, %v440
  %v473 = vsel %vm409, %v345, %v441
  %v474 = vsel %vm410, %v350, %v442
  %v475 = vsel %vm411, %v353, %v443
  %v476 = vsel %vm412, %v358, %v444
  %v477 = vsel %vm413, %v361, %v445
  %v478 = vsel %vm414, %v366, %v446
  %v479 = vsel %vm415, %v369, %v447
  %v480 = vsel %vm416, %v374, %v448
  %v481 = vsel %vm417, %v377, %v449
  %v482 = vsel %vm418, %v382, %v450
  %v483 = vsel %vm419, %v385, %v451
  %v484 = vpack.c.bf16 %v453, %v452
  %v485 = vpack.c.bf16 %v455, %v454
  %v486 = vpack.c.bf16 %v457, %v456
  %v487 = vpack.c.bf16 %v459, %v458
  %v488 = vpack.c.bf16 %v461, %v460
  %v489 = vpack.c.bf16 %v463, %v462
  %v490 = vpack.c.bf16 %v465, %v464
  %v491 = vpack.c.bf16 %v467, %v466
  %v492 = vpack.c.bf16 %v469, %v468
  %v493 = vpack.c.bf16 %v471, %v470
  %v494 = vpack.c.bf16 %v473, %v472
  %v495 = vpack.c.bf16 %v475, %v474
  %v496 = vpack.c.bf16 %v477, %v476
  %v497 = vpack.c.bf16 %v479, %v478
  %v498 = vpack.c.bf16 %v481, %v480
  %v499 = vpack.c.bf16 %v483, %v482
  %v500 = vld [vmem:[%s3] sm:$0xf]
  %v501 = vld [vmem:[%s3 + $0x4] sm:$0xf]
  %v502 = vld [vmem:[%s3 + $0x8] sm:$0xf]
  %v503 = vld [vmem:[%s3 + $0xc] sm:$0xf]
  %v504 = vld [vmem:[%s3 + $0x10] sm:$0xf]
  %v505 = vld [vmem:[%s3 + $0x14] sm:$0xf]
  %v506 = vld [vmem:[%s3 + $0x18] sm:$0xf]
  %v507 = vld [vmem:[%s3 + $0x1c] sm:$0xf]
  %v508 = vld [vmem:[%s3 + $0x20] sm:$0xf]
  %v509 = vld [vmem:[%s3 + $0x24] sm:$0xf]
  %v510 = vld [vmem:[%s3 + $0x28] sm:$0xf]
  %v511 = vld [vmem:[%s3 + $0x2c] sm:$0xf]
  %v512 = vld [vmem:[%s3 + $0x30] sm:$0xf]
  %v513 = vld [vmem:[%s3 + $0x34] sm:$0xf]
  %v514 = vld [vmem:[%s3 + $0x38] sm:$0xf]
  %v515 = vld [vmem:[%s3 + $0x3c] sm:$0xf]
  %v516 = vld [vmem:[%s4] sm:$0x1]
  %v518 = vlaneseq
  %v519 = vshrl.u32 %v518, 7
  %v520 = vsub.s32 0, %v519
  %v521 = vrot.slane %v516, %v520
  %v539 = vunpack.c.l.b16 %v500
  %v540 = vunpack.c.l.b16 %v501
  %v541 = vunpack.c.l.b16 %v502
  %v542 = vunpack.c.l.b16 %v503
  %v543 = vunpack.c.l.b16 %v504
  %v544 = vunpack.c.l.b16 %v505
  %v545 = vunpack.c.l.b16 %v506
  %v546 = vunpack.c.l.b16 %v507
  %v547 = vunpack.c.l.b16 %v508
  %v548 = vunpack.c.l.b16 %v509
  %v549 = vunpack.c.l.b16 %v510
  %v550 = vunpack.c.l.b16 %v511
  %v551 = vunpack.c.l.b16 %v512
  %v552 = vunpack.c.l.b16 %v513
  %v553 = vunpack.c.l.b16 %v514
  %v554 = vunpack.c.l.b16 %v515
  %v555 = vpack.c.b16 %v540, %v539
  %v556 = vpack.c.b16 %v542, %v541
  %v557 = vpack.c.b16 %v544, %v543
  %v558 = vpack.c.b16 %v546, %v545
  %v559 = vpack.c.b16 %v548, %v547
  %v560 = vpack.c.b16 %v550, %v549
  %v561 = vpack.c.b16 %v552, %v551
  %v562 = vpack.c.b16 %v554, %v553
  %571 = vmatprep.subr.bf16.mxu0 0
  %572 = vmatpush1.bf16.msra.mxu0 %v562
  %573 = vmatprep.subr.bf16.mxu0 0
  %574 = vmatpush1.bf16.msra.mxu0 %v561
  %575 = vmatprep.subr.bf16.mxu0 0
  %576 = vmatpush1.bf16.msra.mxu0 %v560
  %577 = vmatprep.subr.bf16.mxu0 0
  %578 = vmatpush1.bf16.msra.mxu0 %v559
  %579 = vmatprep.subr.bf16.mxu0 0
  %580 = vmatpush1.bf16.msra.mxu0 %v558
  %581 = vmatprep.subr.bf16.mxu0 0
  %582 = vmatpush1.bf16.msra.mxu0 %v557
  %583 = vmatprep.subr.bf16.mxu0 0
  %584 = vmatpush1.bf16.msra.mxu0 %v556
  %585 = vmatprep.subr.bf16.mxu0 0
  %586 = vmatpush1.bf16.msra.mxu0 %v555
  %587 = vmatprep.subr.bf16.mxu0 0
  %588 = vmatpush2.bf16.msra.mxu0 0
  %589 = vmatprep.subr.bf16.mxu0 0
  %590 = vmatpush2.bf16.msra.mxu0 0
  %591 = vmatprep.subr.bf16.mxu0 0
  %592 = vmatpush2.bf16.msra.mxu0 0
  %593 = vmatprep.subr.bf16.mxu0 0
  %594 = vmatpush2.bf16.msra.mxu0 0
  %595 = vmatprep.subr.bf16.mxu0 0
  %596 = vmatpush2.bf16.msra.mxu0 0
  %597 = vmatprep.subr.bf16.mxu0 0
  %598 = vmatpush2.bf16.msra.mxu0 0
  %599 = vmatprep.subr.bf16.mxu0 0
  %600 = vmatpush2.bf16.msra.mxu0 0
  %601 = vmatprep.subr.bf16.mxu0 0
  %602 = vmatpush2.bf16.msra.mxu0 0
  %603 = vmatprep.mubr.bf16.mxu0 0
  %604 = vmatmul.mubr.bf16.gmra.mxu0 %v484
  %v605 = vpop.f32.mrf.mxu0
  %v606 = vadd.f32 %v521, %v605
  %v607 = vpop.f32.mrf.mxu0
  %v608 = vpop.f32.mrf.mxu0
  %v609 = vadd.f32 %v521, %v608
  %v610 = vpop.f32.mrf.mxu0
  %611 = vmatprep.mubr.bf16.mxu0 0
  %612 = vmatmul.mubr.bf16.gmra.mxu0 %v485
  %v613 = vpop.f32.mrf.mxu0
  %v614 = vadd.f32 %v521, %v613
  %v615 = vpop.f32.mrf.mxu0
  %v616 = vpop.f32.mrf.mxu0
  %v617 = vadd.f32 %v521, %v616
  %v618 = vpop.f32.mrf.mxu0
  %619 = vmatprep.mubr.bf16.mxu0 0
  %620 = vmatmul.mubr.bf16.gmra.mxu0 %v486
  %v621 = vpop.f32.mrf.mxu0
  %v622 = vadd.f32 %v521, %v621
  %v623 = vpop.f32.mrf.mxu0
  %v624 = vpop.f32.mrf.mxu0
  %v625 = vadd.f32 %v521, %v624
  %v626 = vpop.f32.mrf.mxu0
  %627 = vmatprep.mubr.bf16.mxu0 0
  %628 = vmatmul.mubr.bf16.gmra.mxu0 %v487
  %v629 = vpop.f32.mrf.mxu0
  %v630 = vadd.f32 %v521, %v629
  %v631 = vpop.f32.mrf.mxu0
  %v632 = vpop.f32.mrf.mxu0
  %v633 = vadd.f32 %v521, %v632
  %v634 = vpop.f32.mrf.mxu0
  %635 = vmatprep.mubr.bf16.mxu0 0
  %636 = vmatmul.mubr.bf16.gmra.mxu0 %v488
  %v637 = vpop.f32.mrf.mxu0
  %v638 = vadd.f32 %v521, %v637
  %v639 = vpop.f32.mrf.mxu0
  %v640 = vpop.f32.mrf.mxu0
  %v641 = vadd.f32 %v521, %v640
  %v642 = vpop.f32.mrf.mxu0
  %643 = vmatprep.mubr.bf16.mxu0 0
  %644 = vmatmul.mubr.bf16.gmra.mxu0 %v489
  %v645 = vpop.f32.mrf.mxu0
  %v646 = vadd.f32 %v521, %v645
  %v647 = vpop.f32.mrf.mxu0
  %v648 = vpop.f32.mrf.mxu0
  %v649 = vadd.f32 %v521, %v648
  %v650 = vpop.f32.mrf.mxu0
  %651 = vmatprep.mubr.bf16.mxu0 0
  %652 = vmatmul.mubr.bf16.gmra.mxu0 %v490
  %v653 = vpop.f32.mrf.mxu0
  %v654 = vadd.f32 %v521, %v653
  %v655 = vpop.f32.mrf.mxu0
  %v656 = vpop.f32.mrf.mxu0
  %v657 = vadd.f32 %v521, %v656
  %v658 = vpop.f32.mrf.mxu0
  %659 = vmatprep.mubr.bf16.mxu0 0
  %660 = vmatmul.mubr.bf16.gmra.mxu0 %v491
  %v661 = vpop.f32.mrf.mxu0
  %v662 = vadd.f32 %v521, %v661
  %v663 = vpop.f32.mrf.mxu0
  %v664 = vpop.f32.mrf.mxu0
  %v665 = vadd.f32 %v521, %v664
  %v666 = vpop.f32.mrf.mxu0
  %667 = vmatprep.mubr.bf16.mxu0 0
  %668 = vmatmul.mubr.bf16.gmra.mxu0 %v492
  %v669 = vpop.f32.mrf.mxu0
  %v670 = vadd.f32 %v521, %v669
  %v671 = vpop.f32.mrf.mxu0
  %v672 = vpop.f32.mrf.mxu0
  %v673 = vadd.f32 %v521, %v672
  %v674 = vpop.f32.mrf.mxu0
  %675 = vmatprep.mubr.bf16.mxu0 0
  %676 = vmatmul.mubr.bf16.gmra.mxu0 %v493
  %v677 = vpop.f32.mrf.mxu0
  %v678 = vadd.f32 %v521, %v677
  %v679 = vpop.f32.mrf.mxu0
  %v680 = vpop.f32.mrf.mxu0
  %v681 = vadd.f32 %v521, %v680
  %v682 = vpop.f32.mrf.mxu0
  %683 = vmatprep.mubr.bf16.mxu0 0
  %684 = vmatmul.mubr.bf16.gmra.mxu0 %v494
  %v685 = vpop.f32.mrf.mxu0
  %v686 = vadd.f32 %v521, %v685
  %v687 = vpop.f32.mrf.mxu0
  %v688 = vpop.f32.mrf.mxu0
  %v689 = vadd.f32 %v521, %v688
  %v690 = vpop.f32.mrf.mxu0
  %691 = vmatprep.mubr.bf16.mxu0 0
  %692 = vmatmul.mubr.bf16.gmra.mxu0 %v495
  %v693 = vpop.f32.mrf.mxu0
  %v694 = vadd.f32 %v521, %v693
  %v695 = vpop.f32.mrf.mxu0
  %v696 = vpop.f32.mrf.mxu0
  %v697 = vadd.f32 %v521, %v696
  %v698 = vpop.f32.mrf.mxu0
  %699 = vmatprep.mubr.bf16.mxu0 0
  %700 = vmatmul.mubr.bf16.gmra.mxu0 %v496
  %v701 = vpop.f32.mrf.mxu0
  %v702 = vadd.f32 %v521, %v701
  %v703 = vpop.f32.mrf.mxu0
  %v704 = vpop.f32.mrf.mxu0
  %v705 = vadd.f32 %v521, %v704
  %v706 = vpop.f32.mrf.mxu0
  %707 = vmatprep.mubr.bf16.mxu0 0
  %708 = vmatmul.mubr.bf16.gmra.mxu0 %v497
  %v709 = vpop.f32.mrf.mxu0
  %v710 = vadd.f32 %v521, %v709
  %v711 = vpop.f32.mrf.mxu0
  %v712 = vpop.f32.mrf.mxu0
  %v713 = vadd.f32 %v521, %v712
  %v714 = vpop.f32.mrf.mxu0
  %715 = vmatprep.mubr.bf16.mxu0 0
  %716 = vmatmul.mubr.bf16.gmra.mxu0 %v498
  %v717 = vpop.f32.mrf.mxu0
  %v718 = vadd.f32 %v521, %v717
  %v719 = vpop.f32.mrf.mxu0
  %v720 = vpop.f32.mrf.mxu0
  %v721 = vadd.f32 %v521, %v720
  %v722 = vpop.f32.mrf.mxu0
  %723 = vmatprep.mubr.bf16.mxu0 0
  %724 = vmatmul.mubr.bf16.gmra.mxu0 %v499
  %v725 = vpop.f32.mrf.mxu0
  %v726 = vadd.f32 %v521, %v725
  %v727 = vpop.f32.mrf.mxu0
  %v728 = vpop.f32.mrf.mxu0
  %v729 = vadd.f32 %v521, %v728
  %v730 = vpop.f32.mrf.mxu0
  %731 = vdwg.mxu0
  %v732 = vadd.f32 %v606, %v609
  %v733 = vadd.f32 %v732, %v614
  %v734 = vadd.f32 %v733, %v617
  %v735 = vadd.f32 %v734, %v622
  %v736 = vadd.f32 %v735, %v625
  %v737 = vadd.f32 %v736, %v630
  %v738 = vadd.f32 %v737, %v633
  %v739 = vadd.f32 %v738, %v638
  %v740 = vadd.f32 %v739, %v641
  %v741 = vadd.f32 %v740, %v646
  %v742 = vadd.f32 %v741, %v649
  %v743 = vadd.f32 %v742, %v654
  %v744 = vadd.f32 %v743, %v657
  %v745 = vadd.f32 %v744, %v662
  %v746 = vadd.f32 %v745, %v665
  %v747 = vadd.f32 %v746, %v670
  %v748 = vadd.f32 %v747, %v673
  %v749 = vadd.f32 %v748, %v678
  %v750 = vadd.f32 %v749, %v681
  %v751 = vadd.f32 %v750, %v686
  %v752 = vadd.f32 %v751, %v689
  %v753 = vadd.f32 %v752, %v694
  %v754 = vadd.f32 %v753, %v697
  %v755 = vadd.f32 %v754, %v702
  %v756 = vadd.f32 %v755, %v705
  %v757 = vadd.f32 %v756, %v710
  %v758 = vadd.f32 %v757, %v713
  %v759 = vadd.f32 %v758, %v718
  %v760 = vadd.f32 %v759, %v721
  %v761 = vadd.f32 %v760, %v726
  %v762 = vadd.f32 %v761, %v729
  %v763 = vrot.slane %v762, 4
  %v764 = vadd.f32 %v762, %v763
  %v765 = vrot.slane %v764, 2
  %v766 = vadd.f32 %v764, %v765
  %v767 = vrot.slane %v766, 1
  %v768 = vadd.f32 %v766, %v767
  %v769 = vmul.f32 %v768, 0.00390625
  %v770 = vmul.f32 %v606, %v606
  %v771 = vmul.f32 %v609, %v609
  %v772 = vmul.f32 %v614, %v614
  %v773 = vmul.f32 %v617, %v617
  %v774 = vmul.f32 %v622, %v622
  %v775 = vmul.f32 %v625, %v625
  %v776 = vmul.f32 %v630, %v630
  %v777 = vmul.f32 %v633, %v633
  %v778 = vmul.f32 %v638, %v638
  %v779 = vmul.f32 %v641, %v641
  %v780 = vmul.f32 %v646, %v646
  %v781 = vmul.f32 %v649, %v649
  %v782 = vmul.f32 %v654, %v654
  %v783 = vmul.f32 %v657, %v657
  %v784 = vmul.f32 %v662, %v662
  %v785 = vmul.f32 %v665, %v665
  %v786 = vmul.f32 %v670, %v670
  %v787 = vmul.f32 %v673, %v673
  %v788 = vmul.f32 %v678, %v678
  %v789 = vmul.f32 %v681, %v681
  %v790 = vmul.f32 %v686, %v686
  %v791 = vmul.f32 %v689, %v689
  %v792 = vmul.f32 %v694, %v694
  %v793 = vmul.f32 %v697, %v697
  %v794 = vmul.f32 %v702, %v702
  %v795 = vmul.f32 %v705, %v705
  %v796 = vmul.f32 %v710, %v710
  %v797 = vmul.f32 %v713, %v713
  %v798 = vmul.f32 %v718, %v718
  %v799 = vmul.f32 %v721, %v721
  %v800 = vmul.f32 %v726, %v726
  %v801 = vmul.f32 %v729, %v729
  %v802 = vadd.f32 %v770, %v771
  %v803 = vadd.f32 %v802, %v772
  %v804 = vadd.f32 %v803, %v773
  %v805 = vadd.f32 %v804, %v774
  %v806 = vadd.f32 %v805, %v775
  %v807 = vadd.f32 %v806, %v776
  %v808 = vadd.f32 %v807, %v777
  %v809 = vadd.f32 %v808, %v778
  %v810 = vadd.f32 %v809, %v779
  %v811 = vadd.f32 %v810, %v780
  %v812 = vadd.f32 %v811, %v781
  %v813 = vadd.f32 %v812, %v782
  %v814 = vadd.f32 %v813, %v783
  %v815 = vadd.f32 %v814, %v784
  %v816 = vadd.f32 %v815, %v785
  %v817 = vadd.f32 %v816, %v786
  %v818 = vadd.f32 %v817, %v787
  %v819 = vadd.f32 %v818, %v788
  %v820 = vadd.f32 %v819, %v789
  %v821 = vadd.f32 %v820, %v790
  %v822 = vadd.f32 %v821, %v791
  %v823 = vadd.f32 %v822, %v792
  %v824 = vadd.f32 %v823, %v793
  %v825 = vadd.f32 %v824, %v794
  %v826 = vadd.f32 %v825, %v795
  %v827 = vadd.f32 %v826, %v796
  %v828 = vadd.f32 %v827, %v797
  %v829 = vadd.f32 %v828, %v798
  %v830 = vadd.f32 %v829, %v799
  %v831 = vadd.f32 %v830, %v800
  %v832 = vadd.f32 %v831, %v801
  %v833 = vrot.slane %v832, 4
  %v834 = vadd.f32 %v832, %v833
  %v835 = vrot.slane %v834, 2
  %v836 = vadd.f32 %v834, %v835
  %v837 = vrot.slane %v836, 1
  %v838 = vadd.f32 %v836, %v837
  %v839 = vmul.f32 %v838, 0.00390625
  %v840 = vmul.f32 %v769, %v769
  %v841 = vsub.f32 %v839, %v840
  %v842 = vmax.f32 %v841, 0.0
  %v843 = vadd.f32 %v842, 1e-05
  %v844 = vrsqrt.pop %v843
  %v845 = vsub.f32 %v606, %v769
  %v846 = vsub.f32 %v609, %v769
  %v847 = vsub.f32 %v614, %v769
  %v848 = vsub.f32 %v617, %v769
  %v849 = vsub.f32 %v622, %v769
  %v850 = vsub.f32 %v625, %v769
  %v851 = vsub.f32 %v630, %v769
  %v852 = vsub.f32 %v633, %v769
  %v853 = vsub.f32 %v638, %v769
  %v854 = vsub.f32 %v641, %v769
  %v855 = vsub.f32 %v646, %v769
  %v856 = vsub.f32 %v649, %v769
  %v857 = vsub.f32 %v654, %v769
  %v858 = vsub.f32 %v657, %v769
  %v859 = vsub.f32 %v662, %v769
  %v860 = vsub.f32 %v665, %v769
  %v861 = vsub.f32 %v670, %v769
  %v862 = vsub.f32 %v673, %v769
  %v863 = vsub.f32 %v678, %v769
  %v864 = vsub.f32 %v681, %v769
  %v865 = vsub.f32 %v686, %v769
  %v866 = vsub.f32 %v689, %v769
  %v867 = vsub.f32 %v694, %v769
  %v868 = vsub.f32 %v697, %v769
  %v869 = vsub.f32 %v702, %v769
  %v870 = vsub.f32 %v705, %v769
  %v871 = vsub.f32 %v710, %v769
  %v872 = vsub.f32 %v713, %v769
  %v873 = vsub.f32 %v718, %v769
  %v874 = vsub.f32 %v721, %v769
  %v875 = vsub.f32 %v726, %v769
  %v876 = vsub.f32 %v729, %v769
  %v877 = vmul.f32 %v845, %v844
  %v878 = vmul.f32 %v846, %v844
  %v879 = vmul.f32 %v847, %v844
  %v880 = vmul.f32 %v848, %v844
  %v881 = vmul.f32 %v849, %v844
  %v882 = vmul.f32 %v850, %v844
  %v883 = vmul.f32 %v851, %v844
  %v884 = vmul.f32 %v852, %v844
  %v885 = vmul.f32 %v853, %v844
  %v886 = vmul.f32 %v854, %v844
  %v887 = vmul.f32 %v855, %v844
  %v888 = vmul.f32 %v856, %v844
  %v889 = vmul.f32 %v857, %v844
  %v890 = vmul.f32 %v858, %v844
  %v891 = vmul.f32 %v859, %v844
  %v892 = vmul.f32 %v860, %v844
  %v893 = vmul.f32 %v861, %v844
  %v894 = vmul.f32 %v862, %v844
  %v895 = vmul.f32 %v863, %v844
  %v896 = vmul.f32 %v864, %v844
  %v897 = vmul.f32 %v865, %v844
  %v898 = vmul.f32 %v866, %v844
  %v899 = vmul.f32 %v867, %v844
  %v900 = vmul.f32 %v868, %v844
  %v901 = vmul.f32 %v869, %v844
  %v902 = vmul.f32 %v870, %v844
  %v903 = vmul.f32 %v871, %v844
  %v904 = vmul.f32 %v872, %v844
  %v905 = vmul.f32 %v873, %v844
  %v906 = vmul.f32 %v874, %v844
  %v907 = vmul.f32 %v875, %v844
  %v908 = vmul.f32 %v876, %v844
  %vm909 = vcmp.gt.f32.partialorder %v877, 0.0
  %vm910 = vcmp.gt.f32.partialorder %v878, 0.0
  %vm911 = vcmp.gt.f32.partialorder %v879, 0.0
  %vm912 = vcmp.gt.f32.partialorder %v880, 0.0
  %vm913 = vcmp.gt.f32.partialorder %v881, 0.0
  %vm914 = vcmp.gt.f32.partialorder %v882, 0.0
  %vm915 = vcmp.gt.f32.partialorder %v883, 0.0
  %vm916 = vcmp.gt.f32.partialorder %v884, 0.0
  %vm917 = vcmp.gt.f32.partialorder %v885, 0.0
  %vm918 = vcmp.gt.f32.partialorder %v886, 0.0
  %vm919 = vcmp.gt.f32.partialorder %v887, 0.0
  %vm920 = vcmp.gt.f32.partialorder %v888, 0.0
  %vm921 = vcmp.gt.f32.partialorder %v889, 0.0
  %vm922 = vcmp.gt.f32.partialorder %v890, 0.0
  %vm923 = vcmp.gt.f32.partialorder %v891, 0.0
  %vm924 = vcmp.gt.f32.partialorder %v892, 0.0
  %vm925 = vcmp.gt.f32.partialorder %v893, 0.0
  %vm926 = vcmp.gt.f32.partialorder %v894, 0.0
  %vm927 = vcmp.gt.f32.partialorder %v895, 0.0
  %vm928 = vcmp.gt.f32.partialorder %v896, 0.0
  %vm929 = vcmp.gt.f32.partialorder %v897, 0.0
  %vm930 = vcmp.gt.f32.partialorder %v898, 0.0
  %vm931 = vcmp.gt.f32.partialorder %v899, 0.0
  %vm932 = vcmp.gt.f32.partialorder %v900, 0.0
  %vm933 = vcmp.gt.f32.partialorder %v901, 0.0
  %vm934 = vcmp.gt.f32.partialorder %v902, 0.0
  %vm935 = vcmp.gt.f32.partialorder %v903, 0.0
  %vm936 = vcmp.gt.f32.partialorder %v904, 0.0
  %vm937 = vcmp.gt.f32.partialorder %v905, 0.0
  %vm938 = vcmp.gt.f32.partialorder %v906, 0.0
  %vm939 = vcmp.gt.f32.partialorder %v907, 0.0
  %vm940 = vcmp.gt.f32.partialorder %v908, 0.0
  %v941 = vmul.f32 %v877, 0.2
  %v942 = vmul.f32 %v878, 0.2
  %v943 = vmul.f32 %v879, 0.2
  %v944 = vmul.f32 %v880, 0.2
  %v945 = vmul.f32 %v881, 0.2
  %v946 = vmul.f32 %v882, 0.2
  %v947 = vmul.f32 %v883, 0.2
  %v948 = vmul.f32 %v884, 0.2
  %v949 = vmul.f32 %v885, 0.2
  %v950 = vmul.f32 %v886, 0.2
  %v951 = vmul.f32 %v887, 0.2
  %v952 = vmul.f32 %v888, 0.2
  %v953 = vmul.f32 %v889, 0.2
  %v954 = vmul.f32 %v890, 0.2
  %v955 = vmul.f32 %v891, 0.2
  %v956 = vmul.f32 %v892, 0.2
  %v957 = vmul.f32 %v893, 0.2
  %v958 = vmul.f32 %v894, 0.2
  %v959 = vmul.f32 %v895, 0.2
  %v960 = vmul.f32 %v896, 0.2
  %v961 = vmul.f32 %v897, 0.2
  %v962 = vmul.f32 %v898, 0.2
  %v963 = vmul.f32 %v899, 0.2
  %v964 = vmul.f32 %v900, 0.2
  %v965 = vmul.f32 %v901, 0.2
  %v966 = vmul.f32 %v902, 0.2
  %v967 = vmul.f32 %v903, 0.2
  %v968 = vmul.f32 %v904, 0.2
  %v969 = vmul.f32 %v905, 0.2
  %v970 = vmul.f32 %v906, 0.2
  %v971 = vmul.f32 %v907, 0.2
  %v972 = vmul.f32 %v908, 0.2
  %v973 = vsel %vm909, %v877, %v941
  %v974 = vsel %vm910, %v878, %v942
  %v975 = vsel %vm911, %v879, %v943
  %v976 = vsel %vm912, %v880, %v944
  %v977 = vsel %vm913, %v881, %v945
  %v978 = vsel %vm914, %v882, %v946
  %v979 = vsel %vm915, %v883, %v947
  %v980 = vsel %vm916, %v884, %v948
  %v981 = vsel %vm917, %v885, %v949
  %v982 = vsel %vm918, %v886, %v950
  %v983 = vsel %vm919, %v887, %v951
  %v984 = vsel %vm920, %v888, %v952
  %v985 = vsel %vm921, %v889, %v953
  %v986 = vsel %vm922, %v890, %v954
  %v987 = vsel %vm923, %v891, %v955
  %v988 = vsel %vm924, %v892, %v956
  %v989 = vsel %vm925, %v893, %v957
  %v990 = vsel %vm926, %v894, %v958
  %v991 = vsel %vm927, %v895, %v959
  %v992 = vsel %vm928, %v896, %v960
  %v993 = vsel %vm929, %v897, %v961
  %v994 = vsel %vm930, %v898, %v962
  %v995 = vsel %vm931, %v899, %v963
  %v996 = vsel %vm932, %v900, %v964
  %v997 = vsel %vm933, %v901, %v965
  %v998 = vsel %vm934, %v902, %v966
  %v999 = vsel %vm935, %v903, %v967
  %v1000 = vsel %vm936, %v904, %v968
  %v1001 = vsel %vm937, %v905, %v969
  %v1002 = vsel %vm938, %v906, %v970
  %v1003 = vsel %vm939, %v907, %v971
  %v1004 = vsel %vm940, %v908, %v972
  %v1005 = vpack.c.bf16 %v974, %v973
  %v1006 = vpack.c.bf16 %v976, %v975
  %v1007 = vpack.c.bf16 %v978, %v977
  %v1008 = vpack.c.bf16 %v980, %v979
  %v1009 = vpack.c.bf16 %v982, %v981
  %v1010 = vpack.c.bf16 %v984, %v983
  %v1011 = vpack.c.bf16 %v986, %v985
  %v1012 = vpack.c.bf16 %v988, %v987
  %v1013 = vpack.c.bf16 %v990, %v989
  %v1014 = vpack.c.bf16 %v992, %v991
  %v1015 = vpack.c.bf16 %v994, %v993
  %v1016 = vpack.c.bf16 %v996, %v995
  %v1017 = vpack.c.bf16 %v998, %v997
  %v1018 = vpack.c.bf16 %v1000, %v999
  %v1019 = vpack.c.bf16 %v1002, %v1001
  %v1020 = vpack.c.bf16 %v1004, %v1003
  %v1021 = vld [vmem:[%s5] sm:$0xf]
  %v1022 = vld [vmem:[%s5 + $0x4] sm:$0xf]
  %v1023 = vld [vmem:[%s5 + $0x8] sm:$0xf]
  %v1024 = vld [vmem:[%s5 + $0xc] sm:$0xf]
  %v1025 = vld [vmem:[%s5 + $0x10] sm:$0xf]
  %v1026 = vld [vmem:[%s5 + $0x14] sm:$0xf]
  %v1027 = vld [vmem:[%s5 + $0x18] sm:$0xf]
  %v1028 = vld [vmem:[%s5 + $0x1c] sm:$0xf]
  %v1029 = vld [vmem:[%s5 + $0x20] sm:$0xf]
  %v1030 = vld [vmem:[%s5 + $0x24] sm:$0xf]
  %v1031 = vld [vmem:[%s5 + $0x28] sm:$0xf]
  %v1032 = vld [vmem:[%s5 + $0x2c] sm:$0xf]
  %v1033 = vld [vmem:[%s5 + $0x30] sm:$0xf]
  %v1034 = vld [vmem:[%s5 + $0x34] sm:$0xf]
  %v1035 = vld [vmem:[%s5 + $0x38] sm:$0xf]
  %v1036 = vld [vmem:[%s5 + $0x3c] sm:$0xf]
  %v1037 = vld [vmem:[%s6] sm:$0x1]
  %v1039 = vlaneseq
  %v1040 = vshrl.u32 %v1039, 7
  %v1041 = vsub.s32 0, %v1040
  %v1042 = vrot.slane %v1037, %v1041
  %v1060 = vunpack.c.l.b16 %v1021
  %v1061 = vunpack.c.l.b16 %v1022
  %v1062 = vunpack.c.l.b16 %v1023
  %v1063 = vunpack.c.l.b16 %v1024
  %v1064 = vunpack.c.l.b16 %v1025
  %v1065 = vunpack.c.l.b16 %v1026
  %v1066 = vunpack.c.l.b16 %v1027
  %v1067 = vunpack.c.l.b16 %v1028
  %v1068 = vunpack.c.l.b16 %v1029
  %v1069 = vunpack.c.l.b16 %v1030
  %v1070 = vunpack.c.l.b16 %v1031
  %v1071 = vunpack.c.l.b16 %v1032
  %v1072 = vunpack.c.l.b16 %v1033
  %v1073 = vunpack.c.l.b16 %v1034
  %v1074 = vunpack.c.l.b16 %v1035
  %v1075 = vunpack.c.l.b16 %v1036
  %v1076 = vpack.c.b16 %v1061, %v1060
  %v1077 = vpack.c.b16 %v1063, %v1062
  %v1078 = vpack.c.b16 %v1065, %v1064
  %v1079 = vpack.c.b16 %v1067, %v1066
  %v1080 = vpack.c.b16 %v1069, %v1068
  %v1081 = vpack.c.b16 %v1071, %v1070
  %v1082 = vpack.c.b16 %v1073, %v1072
  %v1083 = vpack.c.b16 %v1075, %v1074
  %1092 = vmatprep.subr.bf16.mxu0 0
  %1093 = vmatpush1.bf16.msra.mxu0 %v1083
  %1094 = vmatprep.subr.bf16.mxu0 0
  %1095 = vmatpush1.bf16.msra.mxu0 %v1082
  %1096 = vmatprep.subr.bf16.mxu0 0
  %1097 = vmatpush1.bf16.msra.mxu0 %v1081
  %1098 = vmatprep.subr.bf16.mxu0 0
  %1099 = vmatpush1.bf16.msra.mxu0 %v1080
  %1100 = vmatprep.subr.bf16.mxu0 0
  %1101 = vmatpush1.bf16.msra.mxu0 %v1079
  %1102 = vmatprep.subr.bf16.mxu0 0
  %1103 = vmatpush1.bf16.msra.mxu0 %v1078
  %1104 = vmatprep.subr.bf16.mxu0 0
  %1105 = vmatpush1.bf16.msra.mxu0 %v1077
  %1106 = vmatprep.subr.bf16.mxu0 0
  %1107 = vmatpush1.bf16.msra.mxu0 %v1076
  %1108 = vmatprep.subr.bf16.mxu0 0
  %1109 = vmatpush2.bf16.msra.mxu0 0
  %1110 = vmatprep.subr.bf16.mxu0 0
  %1111 = vmatpush2.bf16.msra.mxu0 0
  %1112 = vmatprep.subr.bf16.mxu0 0
  %1113 = vmatpush2.bf16.msra.mxu0 0
  %1114 = vmatprep.subr.bf16.mxu0 0
  %1115 = vmatpush2.bf16.msra.mxu0 0
  %1116 = vmatprep.subr.bf16.mxu0 0
  %1117 = vmatpush2.bf16.msra.mxu0 0
  %1118 = vmatprep.subr.bf16.mxu0 0
  %1119 = vmatpush2.bf16.msra.mxu0 0
  %1120 = vmatprep.subr.bf16.mxu0 0
  %1121 = vmatpush2.bf16.msra.mxu0 0
  %1122 = vmatprep.subr.bf16.mxu0 0
  %1123 = vmatpush2.bf16.msra.mxu0 0
  %1124 = vmatprep.mubr.bf16.mxu0 0
  %1125 = vmatmul.mubr.bf16.gmra.mxu0 %v1005
  %v1126 = vpop.f32.mrf.mxu0
  %v1127 = vadd.f32 %v1042, %v1126
  %v1128 = vpop.f32.mrf.mxu0
  %v1129 = vpop.f32.mrf.mxu0
  %v1130 = vadd.f32 %v1042, %v1129
  %v1131 = vpop.f32.mrf.mxu0
  %1132 = vmatprep.mubr.bf16.mxu0 0
  %1133 = vmatmul.mubr.bf16.gmra.mxu0 %v1006
  %v1134 = vpop.f32.mrf.mxu0
  %v1135 = vadd.f32 %v1042, %v1134
  %v1136 = vpop.f32.mrf.mxu0
  %v1137 = vpop.f32.mrf.mxu0
  %v1138 = vadd.f32 %v1042, %v1137
  %v1139 = vpop.f32.mrf.mxu0
  %1140 = vmatprep.mubr.bf16.mxu0 0
  %1141 = vmatmul.mubr.bf16.gmra.mxu0 %v1007
  %v1142 = vpop.f32.mrf.mxu0
  %v1143 = vadd.f32 %v1042, %v1142
  %v1144 = vpop.f32.mrf.mxu0
  %v1145 = vpop.f32.mrf.mxu0
  %v1146 = vadd.f32 %v1042, %v1145
  %v1147 = vpop.f32.mrf.mxu0
  %1148 = vmatprep.mubr.bf16.mxu0 0
  %1149 = vmatmul.mubr.bf16.gmra.mxu0 %v1008
  %v1150 = vpop.f32.mrf.mxu0
  %v1151 = vadd.f32 %v1042, %v1150
  %v1152 = vpop.f32.mrf.mxu0
  %v1153 = vpop.f32.mrf.mxu0
  %v1154 = vadd.f32 %v1042, %v1153
  %v1155 = vpop.f32.mrf.mxu0
  %1156 = vmatprep.mubr.bf16.mxu0 0
  %1157 = vmatmul.mubr.bf16.gmra.mxu0 %v1009
  %v1158 = vpop.f32.mrf.mxu0
  %v1159 = vadd.f32 %v1042, %v1158
  %v1160 = vpop.f32.mrf.mxu0
  %v1161 = vpop.f32.mrf.mxu0
  %v1162 = vadd.f32 %v1042, %v1161
  %v1163 = vpop.f32.mrf.mxu0
  %1164 = vmatprep.mubr.bf16.mxu0 0
  %1165 = vmatmul.mubr.bf16.gmra.mxu0 %v1010
  %v1166 = vpop.f32.mrf.mxu0
  %v1167 = vadd.f32 %v1042, %v1166
  %v1168 = vpop.f32.mrf.mxu0
  %v1169 = vpop.f32.mrf.mxu0
  %v1170 = vadd.f32 %v1042, %v1169
  %v1171 = vpop.f32.mrf.mxu0
  %1172 = vmatprep.mubr.bf16.mxu0 0
  %1173 = vmatmul.mubr.bf16.gmra.mxu0 %v1011
  %v1174 = vpop.f32.mrf.mxu0
  %v1175 = vadd.f32 %v1042, %v1174
  %v1176 = vpop.f32.mrf.mxu0
  %v1177 = vpop.f32.mrf.mxu0
  %v1178 = vadd.f32 %v1042, %v1177
  %v1179 = vpop.f32.mrf.mxu0
  %1180 = vmatprep.mubr.bf16.mxu0 0
  %1181 = vmatmul.mubr.bf16.gmra.mxu0 %v1012
  %v1182 = vpop.f32.mrf.mxu0
  %v1183 = vadd.f32 %v1042, %v1182
  %v1184 = vpop.f32.mrf.mxu0
  %v1185 = vpop.f32.mrf.mxu0
  %v1186 = vadd.f32 %v1042, %v1185
  %v1187 = vpop.f32.mrf.mxu0
  %1188 = vmatprep.mubr.bf16.mxu0 0
  %1189 = vmatmul.mubr.bf16.gmra.mxu0 %v1013
  %v1190 = vpop.f32.mrf.mxu0
  %v1191 = vadd.f32 %v1042, %v1190
  %v1192 = vpop.f32.mrf.mxu0
  %v1193 = vpop.f32.mrf.mxu0
  %v1194 = vadd.f32 %v1042, %v1193
  %v1195 = vpop.f32.mrf.mxu0
  %1196 = vmatprep.mubr.bf16.mxu0 0
  %1197 = vmatmul.mubr.bf16.gmra.mxu0 %v1014
  %v1198 = vpop.f32.mrf.mxu0
  %v1199 = vadd.f32 %v1042, %v1198
  %v1200 = vpop.f32.mrf.mxu0
  %v1201 = vpop.f32.mrf.mxu0
  %v1202 = vadd.f32 %v1042, %v1201
  %v1203 = vpop.f32.mrf.mxu0
  %1204 = vmatprep.mubr.bf16.mxu0 0
  %1205 = vmatmul.mubr.bf16.gmra.mxu0 %v1015
  %v1206 = vpop.f32.mrf.mxu0
  %v1207 = vadd.f32 %v1042, %v1206
  %v1208 = vpop.f32.mrf.mxu0
  %v1209 = vpop.f32.mrf.mxu0
  %v1210 = vadd.f32 %v1042, %v1209
  %v1211 = vpop.f32.mrf.mxu0
  %1212 = vmatprep.mubr.bf16.mxu0 0
  %1213 = vmatmul.mubr.bf16.gmra.mxu0 %v1016
  %v1214 = vpop.f32.mrf.mxu0
  %v1215 = vadd.f32 %v1042, %v1214
  %v1216 = vpop.f32.mrf.mxu0
  %v1217 = vpop.f32.mrf.mxu0
  %v1218 = vadd.f32 %v1042, %v1217
  %v1219 = vpop.f32.mrf.mxu0
  %1220 = vmatprep.mubr.bf16.mxu0 0
  %1221 = vmatmul.mubr.bf16.gmra.mxu0 %v1017
  %v1222 = vpop.f32.mrf.mxu0
  %v1223 = vadd.f32 %v1042, %v1222
  %v1224 = vpop.f32.mrf.mxu0
  %v1225 = vpop.f32.mrf.mxu0
  %v1226 = vadd.f32 %v1042, %v1225
  %v1227 = vpop.f32.mrf.mxu0
  %1228 = vmatprep.mubr.bf16.mxu0 0
  %1229 = vmatmul.mubr.bf16.gmra.mxu0 %v1018
  %v1230 = vpop.f32.mrf.mxu0
  %v1231 = vadd.f32 %v1042, %v1230
  %v1232 = vpop.f32.mrf.mxu0
  %v1233 = vpop.f32.mrf.mxu0
  %v1234 = vadd.f32 %v1042, %v1233
  %v1235 = vpop.f32.mrf.mxu0
  %1236 = vmatprep.mubr.bf16.mxu0 0
  %1237 = vmatmul.mubr.bf16.gmra.mxu0 %v1019
  %v1238 = vpop.f32.mrf.mxu0
  %v1239 = vadd.f32 %v1042, %v1238
  %v1240 = vpop.f32.mrf.mxu0
  %v1241 = vpop.f32.mrf.mxu0
  %v1242 = vadd.f32 %v1042, %v1241
  %v1243 = vpop.f32.mrf.mxu0
  %1244 = vmatprep.mubr.bf16.mxu0 0
  %1245 = vmatmul.mubr.bf16.gmra.mxu0 %v1020
  %v1246 = vpop.f32.mrf.mxu0
  %v1247 = vadd.f32 %v1042, %v1246
  %v1248 = vpop.f32.mrf.mxu0
  %v1249 = vpop.f32.mrf.mxu0
  %v1250 = vadd.f32 %v1042, %v1249
  %v1251 = vpop.f32.mrf.mxu0
  %1252 = vdwg.mxu0
  %1253 = vst [vmem:[%s7] sm:$0xff] %v1127
  %1254 = vst [vmem:[%s7 + $0x8] sm:$0xff] %v1130
  %1255 = vst [vmem:[%s7 + $0x10] sm:$0xff] %v1135
  %1256 = vst [vmem:[%s7 + $0x18] sm:$0xff] %v1138
  %1257 = vst [vmem:[%s7 + $0x20] sm:$0xff] %v1143
  %1258 = vst [vmem:[%s7 + $0x28] sm:$0xff] %v1146
  %1259 = vst [vmem:[%s7 + $0x30] sm:$0xff] %v1151
  %1260 = vst [vmem:[%s7 + $0x38] sm:$0xff] %v1154
  %1261 = vst [vmem:[%s7 + $0x40] sm:$0xff] %v1159
  %1262 = vst [vmem:[%s7 + $0x48] sm:$0xff] %v1162
  %1263 = vst [vmem:[%s7 + $0x50] sm:$0xff] %v1167
  %1264 = vst [vmem:[%s7 + $0x58] sm:$0xff] %v1170
  %1265 = vst [vmem:[%s7 + $0x60] sm:$0xff] %v1175
  %1266 = vst [vmem:[%s7 + $0x68] sm:$0xff] %v1178
  %1267 = vst [vmem:[%s7 + $0x70] sm:$0xff] %v1183
  %1268 = vst [vmem:[%s7 + $0x78] sm:$0xff] %v1186
  %1269 = vst [vmem:[%s7 + $0x80] sm:$0xff] %v1191
  %1270 = vst [vmem:[%s7 + $0x88] sm:$0xff] %v1194
  %1271 = vst [vmem:[%s7 + $0x90] sm:$0xff] %v1199
  %1272 = vst [vmem:[%s7 + $0x98] sm:$0xff] %v1202
  %1273 = vst [vmem:[%s7 + $0xa0] sm:$0xff] %v1207
  %1274 = vst [vmem:[%s7 + $0xa8] sm:$0xff] %v1210
  %1275 = vst [vmem:[%s7 + $0xb0] sm:$0xff] %v1215
  %1276 = vst [vmem:[%s7 + $0xb8] sm:$0xff] %v1218
  %1277 = vst [vmem:[%s7 + $0xc0] sm:$0xff] %v1223
  %1278 = vst [vmem:[%s7 + $0xc8] sm:$0xff] %v1226
  %1279 = vst [vmem:[%s7 + $0xd0] sm:$0xff] %v1231
  %1280 = vst [vmem:[%s7 + $0xd8] sm:$0xff] %v1234
  %1281 = vst [vmem:[%s7 + $0xe0] sm:$0xff] %v1239
  %1282 = vst [vmem:[%s7 + $0xe8] sm:$0xff] %v1242
  %1283 = vst [vmem:[%s7 + $0xf0] sm:$0xff] %v1247
  %1284 = vst [vmem:[%s7 + $0xf8] sm:$0xff] %v1250
  // Predicated region
  $region30: #{encoder_forward.1} parent=0 // pred_check
    _
  $region31: #{encoder_forward.1} parent=0 // pred_check_branch
    %1286 = sbr.rel (0) target = $region33
  $region32: #{encoder_forward.1} parent=0 // pred_region
    _
  $region33: #{encoder_forward.1} parent=0 // pred_fallthru
    _
  // Predicated region
  $region34: #{encoder_forward.1} parent=0 // pred_check
    _
  $region35: #{encoder_forward.1} parent=0 // pred_check_branch
    %1288 = sbr.rel (0) target = $region37
  $region36: #{encoder_forward.1} parent=0 // pred_region
    _
  $region37: #{encoder_forward.1} parent=0 // pred_fallthru
    _

</llo_original>
